<compile_context>
chip_gen: v5e
topology: v5e:2x2
jax: 0.10.0
libtpu: 0.0.40
codegen_flags: <defaults>
</compile_context>

<pallas_src>
import functools

import jax
import jax.numpy as jnp
from jax.experimental import pallas as pl
from jax.experimental.pallas import tpu as pltpu


# ---------------------------------------------------------------------------
# Fused kernel: Conv1d (+bias) -> GroupNorm -> Mish, one batch element per step
# ---------------------------------------------------------------------------
def _conv_gn_mish_kernel(x_ref, w_ref, b_ref, gamma_ref, beta_ref, mgrp_ref,
                         o_ref, *, t_out, inv_count, eps):
    # x_ref   : (T_pad, C_in)   zero-padded input, channels-last
    # w_ref   : (K, C_in, C_out) conv weights, tap-major
    # b_ref   : (1, C_out)       conv bias
    # gamma_ref, beta_ref : (1, C_out) GroupNorm affine
    # mgrp_ref: (C_out, C_out)   group-indicator matrix (1 if same group)
    # o_ref   : (T_out, C_out)
    n_taps = w_ref.shape[0]
    c_out = o_ref.shape[1]

    # ---- Conv1d: K shifted matmuls, f32 accumulation on the MXU ----
    acc = jnp.broadcast_to(b_ref[...], (t_out, c_out)).astype(jnp.float32)
    for k in range(n_taps):                      # static unroll over kernel taps
        acc = acc + jnp.dot(x_ref[pl.ds(k, t_out), :], w_ref[k],
                            preferred_element_type=jnp.float32)

    # ---- GroupNorm (biased variance, matches torch.nn.GroupNorm) ----
    s1 = jnp.sum(acc, axis=0, keepdims=True)          # (1, C_out) sum over T
    s2 = jnp.sum(acc * acc, axis=0, keepdims=True)    # (1, C_out)
    # per-channel value = sum over all channels of its group
    gsum1 = jnp.dot(s1, mgrp_ref[...], preferred_element_type=jnp.float32)
    gsum2 = jnp.dot(s2, mgrp_ref[...], preferred_element_type=jnp.float32)
    mean = gsum1 * inv_count                          # (1, C_out)
    var = gsum2 * inv_count - mean * mean
    inv_std = jax.lax.rsqrt(var + eps)
    y = (acc - mean) * inv_std * gamma_ref[...] + beta_ref[...]

    # ---- Mish: y * tanh(softplus(y)), numerically stable softplus ----
    sp = jnp.maximum(y, 0.0) + jnp.log(1.0 + jnp.exp(-jnp.abs(y)))
    o_ref[...] = (y * jnp.tanh(sp)).astype(o_ref.dtype)


# ---------------------------------------------------------------------------
# Wrapper: PyTorch-layout (B, C_in, T) in, (B, C_out, T_out) out
# ---------------------------------------------------------------------------
def conv1d_block_forward(x, params, *, n_groups=8, eps=1e-5):
    w = params["w"]          # (C_out, C_in, K)  -- torch Conv1d weight layout
    b = params["b"]          # (C_out,)
    gamma = params["gamma"]  # (C_out,)
    beta = params["beta"]    # (C_out,)

    B, C_in, T = x.shape
    C_out, _, K = w.shape
    pad = K // 2
    T_out = T + 2 * pad - K + 1
    assert C_out % n_groups == 0
    cpg = C_out // n_groups

    # channels-last + zero-padded time axis (lane-dense layout for the kernel)
    x_t = jnp.transpose(x, (0, 2, 1))                      # (B, T, C_in)
    x_pad = jnp.pad(x_t, ((0, 0), (pad, pad), (0, 0)))     # (B, T_pad, C_in)
    T_pad = T + 2 * pad

    wk = jnp.transpose(w, (2, 1, 0)).astype(jnp.float32)   # (K, C_in, C_out)
    b2 = b.reshape(1, C_out).astype(jnp.float32)
    g2 = gamma.reshape(1, C_out).astype(jnp.float32)
    be2 = beta.reshape(1, C_out).astype(jnp.float32)
    gid = jnp.arange(C_out) // cpg
    mgrp = (gid[:, None] == gid[None, :]).astype(jnp.float32)  # (C_out, C_out)

    kernel = functools.partial(
        _conv_gn_mish_kernel,
        t_out=T_out,
        inv_count=1.0 / float(cpg * T_out),
        eps=float(eps),
    )

    out = pl.pallas_call(
        kernel,
        out_shape=jax.ShapeDtypeStruct((B, T_out, C_out), jnp.float32),
        grid=(B,),
        in_specs=[
            pl.BlockSpec((None, T_pad, C_in), lambda bi: (bi, 0, 0)),   # per-batch slab
            pl.BlockSpec((K, C_in, C_out), lambda bi: (0, 0, 0)),       # resident weights
            pl.BlockSpec((1, C_out), lambda bi: (0, 0)),                # bias
            pl.BlockSpec((1, C_out), lambda bi: (0, 0)),                # gamma
            pl.BlockSpec((1, C_out), lambda bi: (0, 0)),                # beta
            pl.BlockSpec((C_out, C_out), lambda bi: (0, 0)),            # group matrix
        ],
        out_specs=pl.BlockSpec((None, T_out, C_out), lambda bi: (bi, 0, 0)),
        compiler_params=pltpu.CompilerParams(
            dimension_semantics=("parallel",)),
    )(x_pad, wk, b2, g2, be2, mgrp)

    return jnp.transpose(out, (0, 2, 1))                   # (B, C_out, T_out)


# ---------------------------------------------------------------------------
# Pure-JAX reference (mirrors torch Conv1d + GroupNorm + Mish)
# ---------------------------------------------------------------------------
def conv1d_block_reference(x, params, *, n_groups=8, eps=1e-5):
    w, b = params["w"], params["b"]
    gamma, beta = params["gamma"], params["beta"]
    K = w.shape[-1]
    pad = K // 2
    y = jax.lax.conv_general_dilated(
        x, w, window_strides=(1,), padding=[(pad, pad)],
        dimension_numbers=("NCH", "OIH", "NCH"))
    y = y + b[None, :, None]
    B, C, T = y.shape
    yg = y.reshape(B, n_groups, C // n_groups, T)
    mean = yg.mean(axis=(2, 3), keepdims=True)
    var = ((yg - mean) ** 2).mean(axis=(2, 3), keepdims=True)
    yn = ((yg - mean) / jnp.sqrt(var + eps)).reshape(B, C, T)
    yn = yn * gamma[None, :, None] + beta[None, :, None]
    return yn * jnp.tanh(jax.nn.softplus(yn))


# ---------------------------------------------------------------------------
if __name__ == "__main__":
    key = jax.random.PRNGKey(0)
    k_x, k_w, k_b, k_g, k_be = jax.random.split(key, 5)

    B, C_IN, C_OUT, T, K, GROUPS = 2, 32, 64, 16, 5, 8

    x = jax.random.normal(k_x, (B, C_IN, T), jnp.float32)
    params = {
        "w": jax.random.normal(k_w, (C_OUT, C_IN, K), jnp.float32)
             / jnp.sqrt(jnp.float32(C_IN * K)),
        "b": 0.1 * jax.random.normal(k_b, (C_OUT,), jnp.float32),
        "gamma": 1.0 + 0.1 * jax.random.normal(k_g, (C_OUT,), jnp.float32),
        "beta": 0.1 * jax.random.normal(k_be, (C_OUT,), jnp.float32),
    }

    fwd = jax.jit(functools.partial(conv1d_block_forward, n_groups=GROUPS))
    out = jax.block_until_ready(fwd(x, params))

    assert out.shape == (B, C_OUT, T), out.shape
    assert out.dtype == jnp.float32
    assert bool(jnp.all(jnp.isfinite(out)))

    ref = conv1d_block_reference(x, params, n_groups=GROUPS)
    max_err = float(jnp.max(jnp.abs(out - ref)))
    assert max_err < 1e-3, f"mismatch vs reference: {max_err}"

    print("KERNEL_OK")
</pallas_src>

<mosaic_0001>
module attributes {stable_mosaic.version = 11 : i64} {
  func.func @_conv_gn_mish_kernel(%arg0: i32, %arg1: memref<1x20x32xf32, #tpu.memory_space<vmem>>, %arg2: memref<5x32x64xf32, #tpu.memory_space<vmem>>, %arg3: memref<1x64xf32, #tpu.memory_space<vmem>>, %arg4: memref<1x64xf32, #tpu.memory_space<vmem>>, %arg5: memref<1x64xf32, #tpu.memory_space<vmem>>, %arg6: memref<64x64xf32, #tpu.memory_space<vmem>>, %arg7: memref<1x16x64xf32, #tpu.memory_space<vmem>>) attributes {dimension_semantics = [#tpu.dimension_semantics<parallel>], iteration_bounds = array<i64: 2>, scalar_prefetch = 0 : i64, scratch_operands = 0 : i64, tpu.core_type = #tpu.core_type<tc>, window_params = [{transform_indices = @transform_0, window_bounds = array<i64: 1, 20, 32>}, {pipeline_mode = #tpu.pipeline_mode<synchronous>, transform_indices = @transform_1, window_bounds = array<i64: 5, 32, 64>}, {pipeline_mode = #tpu.pipeline_mode<synchronous>, transform_indices = @transform_2, window_bounds = array<i64: 1, 64>}, {pipeline_mode = #tpu.pipeline_mode<synchronous>, transform_indices = @transform_3, window_bounds = array<i64: 1, 64>}, {pipeline_mode = #tpu.pipeline_mode<synchronous>, transform_indices = @transform_4, window_bounds = array<i64: 1, 64>}, {pipeline_mode = #tpu.pipeline_mode<synchronous>, transform_indices = @transform_5, window_bounds = array<i64: 64, 64>}, {transform_indices = @transform_6, window_bounds = array<i64: 1, 16, 64>}]} {
    %c0 = arith.constant 0 : index
    %c0_0 = arith.constant 0 : index
    %0 = vector.load %arg3[%c0, %c0_0] : memref<1x64xf32, #tpu.memory_space<vmem>>, vector<1x64xf32>
    %1 = vector.shape_cast %0 : vector<1x64xf32> to vector<1x64xf32>
    %2 = vector.broadcast %1 : vector<1x64xf32> to vector<16x64xf32>
    %c0_1 = arith.constant 0 : index
    %c0_2 = arith.constant 0 : index
    %c0_3 = arith.constant 0 : index
    %3 = vector.load %arg1[%c0_1, %c0_2, %c0_3] : memref<1x20x32xf32, #tpu.memory_space<vmem>>, vector<1x16x32xf32>
    %4 = vector.shape_cast %3 : vector<1x16x32xf32> to vector<16x32xf32>
    %c0_4 = arith.constant 0 : index
    %c0_5 = arith.constant 0 : index
    %c0_6 = arith.constant 0 : index
    %5 = vector.load %arg2[%c0_4, %c0_5, %c0_6] : memref<5x32x64xf32, #tpu.memory_space<vmem>>, vector<1x32x64xf32>
    %6 = vector.shape_cast %5 : vector<1x32x64xf32> to vector<32x64xf32>
    %cst = arith.constant dense<0.000000e+00> : vector<16x64xf32>
    %7 = tpu.matmul %4, %6, %cst {dimension_numbers = #tpu.dot_dimension_numbers<[1], [0], [0], [1], [0, 0, 1, 1], [], []>} : vector<16x32xf32>, vector<32x64xf32>, vector<16x64xf32> -> vector<16x64xf32>
    %8 = arith.addf %2, %7 : vector<16x64xf32>
    %c0_7 = arith.constant 0 : index
    %c1 = arith.constant 1 : index
    %c0_8 = arith.constant 0 : index
    %9 = vector.load %arg1[%c0_7, %c1, %c0_8] : memref<1x20x32xf32, #tpu.memory_space<vmem>>, vector<1x16x32xf32>
    %10 = vector.shape_cast %9 : vector<1x16x32xf32> to vector<16x32xf32>
    %c1_9 = arith.constant 1 : index
    %c0_10 = arith.constant 0 : index
    %c0_11 = arith.constant 0 : index
    %11 = vector.load %arg2[%c1_9, %c0_10, %c0_11] : memref<5x32x64xf32, #tpu.memory_space<vmem>>, vector<1x32x64xf32>
    %12 = vector.shape_cast %11 : vector<1x32x64xf32> to vector<32x64xf32>
    %cst_12 = arith.constant dense<0.000000e+00> : vector<16x64xf32>
    %13 = tpu.matmul %10, %12, %cst_12 {dimension_numbers = #tpu.dot_dimension_numbers<[1], [0], [0], [1], [0, 0, 1, 1], [], []>} : vector<16x32xf32>, vector<32x64xf32>, vector<16x64xf32> -> vector<16x64xf32>
    %14 = arith.addf %8, %13 : vector<16x64xf32>
    %c0_13 = arith.constant 0 : index
    %c2 = arith.constant 2 : index
    %c0_14 = arith.constant 0 : index
    %15 = vector.load %arg1[%c0_13, %c2, %c0_14] : memref<1x20x32xf32, #tpu.memory_space<vmem>>, vector<1x16x32xf32>
    %16 = vector.shape_cast %15 : vector<1x16x32xf32> to vector<16x32xf32>
    %c2_15 = arith.constant 2 : index
    %c0_16 = arith.constant 0 : index
    %c0_17 = arith.constant 0 : index
    %17 = vector.load %arg2[%c2_15, %c0_16, %c0_17] : memref<5x32x64xf32, #tpu.memory_space<vmem>>, vector<1x32x64xf32>
    %18 = vector.shape_cast %17 : vector<1x32x64xf32> to vector<32x64xf32>
    %cst_18 = arith.constant dense<0.000000e+00> : vector<16x64xf32>
    %19 = tpu.matmul %16, %18, %cst_18 {dimension_numbers = #tpu.dot_dimension_numbers<[1], [0], [0], [1], [0, 0, 1, 1], [], []>} : vector<16x32xf32>, vector<32x64xf32>, vector<16x64xf32> -> vector<16x64xf32>
    %20 = arith.addf %14, %19 : vector<16x64xf32>
    %c0_19 = arith.constant 0 : index
    %c3 = arith.constant 3 : index
    %c0_20 = arith.constant 0 : index
    %21 = vector.load %arg1[%c0_19, %c3, %c0_20] : memref<1x20x32xf32, #tpu.memory_space<vmem>>, vector<1x16x32xf32>
    %22 = vector.shape_cast %21 : vector<1x16x32xf32> to vector<16x32xf32>
    %c3_21 = arith.constant 3 : index
    %c0_22 = arith.constant 0 : index
    %c0_23 = arith.constant 0 : index
    %23 = vector.load %arg2[%c3_21, %c0_22, %c0_23] : memref<5x32x64xf32, #tpu.memory_space<vmem>>, vector<1x32x64xf32>
    %24 = vector.shape_cast %23 : vector<1x32x64xf32> to vector<32x64xf32>
    %cst_24 = arith.constant dense<0.000000e+00> : vector<16x64xf32>
    %25 = tpu.matmul %22, %24, %cst_24 {dimension_numbers = #tpu.dot_dimension_numbers<[1], [0], [0], [1], [0, 0, 1, 1], [], []>} : vector<16x32xf32>, vector<32x64xf32>, vector<16x64xf32> -> vector<16x64xf32>
    %26 = arith.addf %20, %25 : vector<16x64xf32>
    %c0_25 = arith.constant 0 : index
    %c4 = arith.constant 4 : index
    %c0_26 = arith.constant 0 : index
    %27 = vector.load %arg1[%c0_25, %c4, %c0_26] : memref<1x20x32xf32, #tpu.memory_space<vmem>>, vector<1x16x32xf32>
    %28 = vector.shape_cast %27 : vector<1x16x32xf32> to vector<16x32xf32>
    %c4_27 = arith.constant 4 : index
    %c0_28 = arith.constant 0 : index
    %c0_29 = arith.constant 0 : index
    %29 = vector.load %arg2[%c4_27, %c0_28, %c0_29] : memref<5x32x64xf32, #tpu.memory_space<vmem>>, vector<1x32x64xf32>
    %30 = vector.shape_cast %29 : vector<1x32x64xf32> to vector<32x64xf32>
    %cst_30 = arith.constant dense<0.000000e+00> : vector<16x64xf32>
    %31 = tpu.matmul %28, %30, %cst_30 {dimension_numbers = #tpu.dot_dimension_numbers<[1], [0], [0], [1], [0, 0, 1, 1], [], []>} : vector<16x32xf32>, vector<32x64xf32>, vector<16x64xf32> -> vector<16x64xf32>
    %32 = arith.addf %26, %31 : vector<16x64xf32>
    %cst_31 = arith.constant dense<0.000000e+00> : vector<64xf32>
    %33 = vector.multi_reduction <add>, %32, %cst_31 [0] : vector<16x64xf32> to vector<64xf32>
    %34 = vector.shape_cast %33 : vector<64xf32> to vector<1x64xf32>
    %35 = arith.mulf %32, %32 : vector<16x64xf32>
    %cst_32 = arith.constant dense<0.000000e+00> : vector<64xf32>
    %36 = vector.multi_reduction <add>, %35, %cst_32 [0] : vector<16x64xf32> to vector<64xf32>
    %37 = vector.shape_cast %36 : vector<64xf32> to vector<1x64xf32>
    %c0_33 = arith.constant 0 : index
    %c0_34 = arith.constant 0 : index
    %38 = vector.load %arg6[%c0_33, %c0_34] : memref<64x64xf32, #tpu.memory_space<vmem>>, vector<64x64xf32>
    %cst_35 = arith.constant dense<0.000000e+00> : vector<1x64xf32>
    %39 = tpu.matmul %34, %38, %cst_35 {dimension_numbers = #tpu.dot_dimension_numbers<[1], [0], [0], [1], [0, 0, 1, 1], [], []>} : vector<1x64xf32>, vector<64x64xf32>, vector<1x64xf32> -> vector<1x64xf32>
    %c0_36 = arith.constant 0 : index
    %c0_37 = arith.constant 0 : index
    %40 = vector.load %arg6[%c0_36, %c0_37] : memref<64x64xf32, #tpu.memory_space<vmem>>, vector<64x64xf32>
    %cst_38 = arith.constant dense<0.000000e+00> : vector<1x64xf32>
    %41 = tpu.matmul %37, %40, %cst_38 {dimension_numbers = #tpu.dot_dimension_numbers<[1], [0], [0], [1], [0, 0, 1, 1], [], []>} : vector<1x64xf32>, vector<64x64xf32>, vector<1x64xf32> -> vector<1x64xf32>
    %cst_39 = arith.constant 7.812500e-03 : f32
    %42 = vector.broadcast %cst_39 : f32 to vector<1x64xf32>
    %43 = arith.mulf %39, %42 : vector<1x64xf32>
    %cst_40 = arith.constant 7.812500e-03 : f32
    %44 = vector.broadcast %cst_40 : f32 to vector<1x64xf32>
    %45 = arith.mulf %41, %44 : vector<1x64xf32>
    %46 = arith.mulf %43, %43 : vector<1x64xf32>
    %47 = arith.subf %45, %46 : vector<1x64xf32>
    %cst_41 = arith.constant 9.99999974E-6 : f32
    %48 = vector.broadcast %cst_41 : f32 to vector<1x64xf32>
    %49 = arith.addf %47, %48 : vector<1x64xf32>
    %50 = math.rsqrt %49 : vector<1x64xf32>
    %51 = vector.broadcast %43 : vector<1x64xf32> to vector<16x64xf32>
    %52 = arith.subf %32, %51 : vector<16x64xf32>
    %53 = vector.broadcast %50 : vector<1x64xf32> to vector<16x64xf32>
    %54 = arith.mulf %52, %53 : vector<16x64xf32>
    %c0_42 = arith.constant 0 : index
    %c0_43 = arith.constant 0 : index
    %55 = vector.load %arg4[%c0_42, %c0_43] : memref<1x64xf32, #tpu.memory_space<vmem>>, vector<1x64xf32>
    %56 = vector.broadcast %55 : vector<1x64xf32> to vector<16x64xf32>
    %57 = arith.mulf %54, %56 : vector<16x64xf32>
    %c0_44 = arith.constant 0 : index
    %c0_45 = arith.constant 0 : index
    %58 = vector.load %arg5[%c0_44, %c0_45] : memref<1x64xf32, #tpu.memory_space<vmem>>, vector<1x64xf32>
    %59 = vector.broadcast %58 : vector<1x64xf32> to vector<16x64xf32>
    %60 = arith.addf %57, %59 : vector<16x64xf32>
    %cst_46 = arith.constant 0.000000e+00 : f32
    %61 = vector.broadcast %cst_46 : f32 to vector<16x64xf32>
    %62 = arith.maximumf %60, %61 : vector<16x64xf32>
    %63 = math.absf %60 : vector<16x64xf32>
    %cst_47 = arith.constant 0.000000e+00 : f32
    %64 = vector.broadcast %cst_47 : f32 to vector<16x64xf32>
    %65 = arith.subf %64, %63 : vector<16x64xf32>
    %66 = math.exp %65 : vector<16x64xf32>
    %cst_48 = arith.constant 1.000000e+00 : f32
    %67 = vector.broadcast %cst_48 : f32 to vector<16x64xf32>
    %68 = arith.addf %67, %66 : vector<16x64xf32>
    %69 = math.log %68 : vector<16x64xf32>
    %70 = arith.addf %62, %69 : vector<16x64xf32>
    %71 = math.tanh %70 : vector<16x64xf32>
    %72 = arith.mulf %60, %71 : vector<16x64xf32>
    %c0_49 = arith.constant 0 : index
    %c0_50 = arith.constant 0 : index
    %c0_51 = arith.constant 0 : index
    %73 = vector.load %arg7[%c0_49, %c0_50, %c0_51] : memref<1x16x64xf32, #tpu.memory_space<vmem>>, vector<1x16x64xf32>
    %74 = vector.shape_cast %73 : vector<1x16x64xf32> to vector<16x64xf32>
    %75 = vector.shape_cast %72 : vector<16x64xf32> to vector<1x16x64xf32>
    tpu.vector_store %arg7[%c0_49, %c0_50, %c0_51], %75 {strides = array<i32>} : memref<1x16x64xf32, #tpu.memory_space<vmem>>, vector<1x16x64xf32>,
    return
  }
  func.func @transform_0(%arg0: i32) -> (i32, i32, i32) {
    %c0_i32 = arith.constant 0 : i32
    %c0_i32_0 = arith.constant 0 : i32
    %c0_i32_1 = arith.constant 0 : i32
    return %arg0, %c0_i32, %c0_i32_0 : i32, i32, i32
  }
  func.func @transform_1(%arg0: i32) -> (i32, i32, i32) {
    %c0_i32 = arith.constant 0 : i32
    %c0_i32_0 = arith.constant 0 : i32
    %c0_i32_1 = arith.constant 0 : i32
    %c0_i32_2 = arith.constant 0 : i32
    return %c0_i32, %c0_i32_0, %c0_i32_1 : i32, i32, i32
  }
  func.func @transform_2(%arg0: i32) -> (i32, i32) {
    %c0_i32 = arith.constant 0 : i32
    %c0_i32_0 = arith.constant 0 : i32
    %c0_i32_1 = arith.constant 0 : i32
    return %c0_i32, %c0_i32_0 : i32, i32
  }
  func.func @transform_3(%arg0: i32) -> (i32, i32) {
    %c0_i32 = arith.constant 0 : i32
    %c0_i32_0 = arith.constant 0 : i32
    %c0_i32_1 = arith.constant 0 : i32
    return %c0_i32, %c0_i32_0 : i32, i32
  }
  func.func @transform_4(%arg0: i32) -> (i32, i32) {
    %c0_i32 = arith.constant 0 : i32
    %c0_i32_0 = arith.constant 0 : i32
    %c0_i32_1 = arith.constant 0 : i32
    return %c0_i32, %c0_i32_0 : i32, i32
  }
  func.func @transform_5(%arg0: i32) -> (i32, i32) {
    %c0_i32 = arith.constant 0 : i32
    %c0_i32_0 = arith.constant 0 : i32
    %c0_i32_1 = arith.constant 0 : i32
    return %c0_i32, %c0_i32_0 : i32, i32
  }
  func.func @transform_6(%arg0: i32) -> (i32, i32, i32) {
    %c0_i32 = arith.constant 0 : i32
    %c0_i32_0 = arith.constant 0 : i32
    %c0_i32_1 = arith.constant 0 : i32
    return %arg0, %c0_i32, %c0_i32_0 : i32, i32, i32
  }
}

</mosaic_0001>

<llo_original>
// kernel: conv1d_block_forward.1
$region0: #{conv1d_block_forward.1}
  #allocation0 [shape = 'u32[]', space=smem, size = 0x4, offset = 0x4, fixed_abs, tag = 'smem constant byte address 0x4 - core index']
  #allocation1 [shape = 'u32[72,128]{1,0:T(1,128)}', space=vmem, size = 0x9000, scoped, tag = 'internal scratch']
  %s0 = inlined_call_operand.vmem [shape: f32[2,20,32], index: 0, kind: input, shape index: {}]
  %s1 = inlined_call_operand.hbm [shape: f32[5,32,64], index: 1, kind: input, shape index: {}]
  %s2 = inlined_call_operand.vmem [shape: f32[1,64], index: 2, kind: input, shape index: {}]
  %s3 = inlined_call_operand.vmem [shape: f32[1,64], index: 3, kind: input, shape index: {}]
  %s4 = inlined_call_operand.vmem [shape: f32[1,64], index: 4, kind: input, shape index: {}]
  %s5 = inlined_call_operand.vmem [shape: f32[64,64], index: 5, kind: input, shape index: {}]
  %s6 = inlined_call_operand.hbm [shape: f32[2,16,64], index: 6, kind: output, shape index: {}]
  %s7 = sld [smem:[#allocation0]]
  $region61: #{conv1d_block_forward.1} parent=0
    _
  %s9 = ssub.s32 1, %s7
  %s10 = scalar_select 0, %s9, %s7
  $region1: #{conv1d_block_forward.1} parent=0
    #allocation2 [shape = 'u8[81920]{0}', space=vmem, size = 0x14000, scoped, tag = 'input window, operand 1, single buffered']
    #allocation3 [shape = 's32[2]{0}', space=sflag, size = 0x8, scoped, tag = 'scoped memory for conv1d_block_forward.1']
    #allocation4 [shape = 's32[2]{0}', space=sflag, size = 0x8, scoped, tag = 'scoped memory for conv1d_block_forward.1']
    #allocation5 [shape = 'u8[16384]{0}', space=vmem, size = 0x4000, scoped, tag = 'output window, operand 0']
    %11 = vsyncpa [#allocation3], 0
    %12 = vsyncpa [#allocation4], 0
    %s13 = scalar_lea.sflag [#allocation4], 1
    %14 = vsyncpa %s13, 0
    loop: start=0, step=1, limit=4
    $region2: #{conv1d_block_forward.1} parent=1 // loop_pre_header
      _
    $region3: #{conv1d_block_forward.1} parent=1 // loop_header
      %s16 = sphi 0, %s20
      %p17 = scmp.ge.s32.totalorder %s16, 4
      %s26 = sphi 0, %s28
      %s29 = sphi 0, %s26
      %s30 = sphi 0, %s29
      %s46 = sphi 0, %s30
      %s50 = sphi 0, %s50
      %s52 = sphi 0, %s50
      %s53 = sphi 0, %s52
      %s67 = sphi 0, %s53
      %s71 = sphi 0, %s71
      %s73 = sphi 0, %s71
      %s74 = sphi 0, %s73
      %s88 = sphi 0, %s74
      %s92 = sphi 0, %s92
      %s94 = sphi 0, %s92
      %s95 = sphi 0, %s94
      %s109 = sphi 0, %s95
      %s113 = sphi 0, %s113
      %s115 = sphi 0, %s113
      %s116 = sphi 0, %s115
      %s130 = sphi 0, %s116
      %s134 = sphi 0, %s134
      %s136 = sphi 0, %s134
      %s137 = sphi 0, %s136
      %s151 = sphi 0, %s137
      %s157 = sphi 0, %s159
      %s160 = sphi 0, %s157
      %s161 = sphi 0, %s160
      %s177 = sphi 0, %s161
    $region4: #{conv1d_block_forward.1} parent=1 // loop_header_branch
      %19 = sbr.rel (%p17) target = $region8
    $region5: #{conv1d_block_forward.1} parent=1 // loop_body
      %s21 = ssub.s32 %s16, 1
      %s22 = ssub.s32 %s16, 2
      %s23 = sadd.s32 %s16, 1
      %s24 = ssub.s32 %s16, %s23
      %p25 = scmp.eq.s32.totalorder %s24, 0
      %s27 = sadd.s32 %s26, 1
      %s28 = scalar_select %p25, %s26, %s27
      %p31 = pneg %p25
      %p32 = scmp.eq.s32.totalorder %s16, 1
      %p33 = por %p31, %p32
      %p34 = scmp.ne.s32.totalorder %s26, %s29
      %p35 = scmp.eq.s32.totalorder %s16, 0
      %p36 = por %p34, %p35
      %p37 = scmp.ne.s32.totalorder %s26, %s29
      %p38 = scmp.eq.s32.totalorder %s21, 1
      %p39 = por %p37, %p38
      %p40 = scmp.ne.s32.totalorder %s29, %s30
      %p41 = scmp.eq.s32.totalorder %s21, 0
      %p42 = por %p40, %p41
      %p43 = scmp.ne.s32.totalorder %s29, %s30
      %p44 = scmp.eq.s32.totalorder %s22, 1
      %p45 = por %p43, %p44
      %p47 = scmp.ne.s32.totalorder %s30, %s46
      %p48 = scmp.eq.s32.totalorder %s22, 0
      %p49 = por %p47, %p48
      %s51 = sadd.s32 %s50, 1
      %p54 = scmp.eq.s32.totalorder %s16, 1
      %p55 = scmp.ne.s32.totalorder %s50, %s52
      %p56 = scmp.eq.s32.totalorder %s16, 0
      %p57 = por %p55, %p56
      %p58 = scmp.ne.s32.totalorder %s50, %s52
      %p59 = scmp.eq.s32.totalorder %s21, 1
      %p60 = por %p58, %p59
      %p61 = scmp.ne.s32.totalorder %s52, %s53
      %p62 = scmp.eq.s32.totalorder %s21, 0
      %p63 = por %p61, %p62
      %p64 = scmp.ne.s32.totalorder %s52, %s53
      %p65 = scmp.eq.s32.totalorder %s22, 1
      %p66 = por %p64, %p65
      %p68 = scmp.ne.s32.totalorder %s53, %s67
      %p69 = scmp.eq.s32.totalorder %s22, 0
      %p70 = por %p68, %p69
      %s72 = sadd.s32 %s71, 1
      %p75 = scmp.eq.s32.totalorder %s16, 1
      %p76 = scmp.ne.s32.totalorder %s71, %s73
      %p77 = scmp.eq.s32.totalorder %s16, 0
      %p78 = por %p76, %p77
      %p79 = scmp.ne.s32.totalorder %s71, %s73
      %p80 = scmp.eq.s32.totalorder %s21, 1
      %p81 = por %p79, %p80
      %p82 = scmp.ne.s32.totalorder %s73, %s74
      %p83 = scmp.eq.s32.totalorder %s21, 0
      %p84 = por %p82, %p83
      %p85 = scmp.ne.s32.totalorder %s73, %s74
      %p86 = scmp.eq.s32.totalorder %s22, 1
      %p87 = por %p85, %p86
      %p89 = scmp.ne.s32.totalorder %s74, %s88
      %p90 = scmp.eq.s32.totalorder %s22, 0
      %p91 = por %p89, %p90
      %s93 = sadd.s32 %s92, 1
      %p96 = scmp.eq.s32.totalorder %s16, 1
      %p97 = scmp.ne.s32.totalorder %s92, %s94
      %p98 = scmp.eq.s32.totalorder %s16, 0
      %p99 = por %p97, %p98
      %p100 = scmp.ne.s32.totalorder %s92, %s94
      %p101 = scmp.eq.s32.totalorder %s21, 1
      %p102 = por %p100, %p101
      %p103 = scmp.ne.s32.totalorder %s94, %s95
      %p104 = scmp.eq.s32.totalorder %s21, 0
      %p105 = por %p103, %p104
      %p106 = scmp.ne.s32.totalorder %s94, %s95
      %p107 = scmp.eq.s32.totalorder %s22, 1
      %p108 = por %p106, %p107
      %p110 = scmp.ne.s32.totalorder %s95, %s109
      %p111 = scmp.eq.s32.totalorder %s22, 0
      %p112 = por %p110, %p111
      %s114 = sadd.s32 %s113, 1
      %p117 = scmp.eq.s32.totalorder %s16, 1
      %p118 = scmp.ne.s32.totalorder %s113, %s115
      %p119 = scmp.eq.s32.totalorder %s16, 0
      %p120 = por %p118, %p119
      %p121 = scmp.ne.s32.totalorder %s113, %s115
      %p122 = scmp.eq.s32.totalorder %s21, 1
      %p123 = por %p121, %p122
      %p124 = scmp.ne.s32.totalorder %s115, %s116
      %p125 = scmp.eq.s32.totalorder %s21, 0
      %p126 = por %p124, %p125
      %p127 = scmp.ne.s32.totalorder %s115, %s116
      %p128 = scmp.eq.s32.totalorder %s22, 1
      %p129 = por %p127, %p128
      %p131 = scmp.ne.s32.totalorder %s116, %s130
      %p132 = scmp.eq.s32.totalorder %s22, 0
      %p133 = por %p131, %p132
      %s135 = sadd.s32 %s134, 1
      %p138 = scmp.eq.s32.totalorder %s16, 1
      %p139 = scmp.ne.s32.totalorder %s134, %s136
      %p140 = scmp.eq.s32.totalorder %s16, 0
      %p141 = por %p139, %p140
      %p142 = scmp.ne.s32.totalorder %s134, %s136
      %p143 = scmp.eq.s32.totalorder %s21, 1
      %p144 = por %p142, %p143
      %p145 = scmp.ne.s32.totalorder %s136, %s137
      %p146 = scmp.eq.s32.totalorder %s21, 0
      %p147 = por %p145, %p146
      %p148 = scmp.ne.s32.totalorder %s136, %s137
      %p149 = scmp.eq.s32.totalorder %s22, 1
      %p150 = por %p148, %p149
      %p152 = scmp.ne.s32.totalorder %s137, %s151
      %p153 = scmp.eq.s32.totalorder %s22, 0
      %p154 = por %p152, %p153
      %s155 = ssub.s32 %s16, %s23
      %p156 = scmp.eq.s32.totalorder %s155, 0
      %s158 = sadd.s32 %s157, 1
      %s159 = scalar_select %p156, %s157, %s158
      %p162 = pneg %p156
      %p163 = scmp.eq.s32.totalorder %s16, 1
      %p164 = por %p162, %p163
      %p165 = scmp.ne.s32.totalorder %s157, %s160
      %p166 = scmp.eq.s32.totalorder %s16, 0
      %p167 = por %p165, %p166
      %p168 = scmp.ne.s32.totalorder %s157, %s160
      %p169 = scmp.eq.s32.totalorder %s21, 1
      %p170 = por %p168, %p169
      %p171 = scmp.ne.s32.totalorder %s160, %s161
      %p172 = scmp.eq.s32.totalorder %s21, 0
      %p173 = por %p171, %p172
      %p174 = scmp.ne.s32.totalorder %s160, %s161
      %p175 = scmp.eq.s32.totalorder %s22, 1
      %p176 = por %p174, %p175
      %p178 = scmp.ne.s32.totalorder %s161, %s177
      %p179 = scmp.eq.s32.totalorder %s22, 0
      %p180 = por %p178, %p179
      %p181 = scmp.le.s32.totalorder 1, %s16
      %p182 = scmp.lt.s32.totalorder %s16, 3
      %p183 = pnand %p181, %p182
      %p184 = pneg %p183
      // Predicated region
      $region9: #{conv1d_block_forward.1} parent=5 // pred_check
        _
      $region10: #{conv1d_block_forward.1} parent=5 // pred_check_branch
        %186 = sbr.rel (%p183) target = $region12
      $region11: #{conv1d_block_forward.1} parent=5 // pred_region
        %s187 = ssub.s32 %s16, 1
        // Predicated region
        $region13: #{conv1d_block_forward.1} parent=11 // pred_check
          %p188 = pneg %p63
        $region14: #{conv1d_block_forward.1} parent=11 // pred_check_branch
          %190 = sbr.rel (%p188) target = $region16
        $region15: #{conv1d_block_forward.1} parent=11 // pred_region
          %192 = vsyncadd [#allocation3], 0
          %s193 = sshll.u32 %s1, 4
          %s194 = int_to_ptr.hbm [resolvable:$true] %s193
          %s195 = sshll.u32 [#allocation2], 4
          %s196 = int_to_ptr.vmem [resolvable:$true] %s195
          %201 = dma.hbm_to_vmem [thread:$0]  %s194, 2560, %s196, [#allocation3], 128, 128, 8
        $region16: #{conv1d_block_forward.1} parent=11 // pred_fallthru
          _
        // Predicated region
        $region17: #{conv1d_block_forward.1} parent=11 // pred_check
          %p202 = pneg %p84
        $region18: #{conv1d_block_forward.1} parent=11 // pred_check_branch
          %204 = sbr.rel (%p202) target = $region20
        $region19: #{conv1d_block_forward.1} parent=11 // pred_region
          _
        $region20: #{conv1d_block_forward.1} parent=11 // pred_fallthru
          _
        // Predicated region
        $region21: #{conv1d_block_forward.1} parent=11 // pred_check
          %p205 = pneg %p105
        $region22: #{conv1d_block_forward.1} parent=11 // pred_check_branch
          %207 = sbr.rel (%p205) target = $region24
        $region23: #{conv1d_block_forward.1} parent=11 // pred_region
          _
        $region24: #{conv1d_block_forward.1} parent=11 // pred_fallthru
          _
        // Predicated region
        $region25: #{conv1d_block_forward.1} parent=11 // pred_check
          %p208 = pneg %p126
        $region26: #{conv1d_block_forward.1} parent=11 // pred_check_branch
          %210 = sbr.rel (%p208) target = $region28
        $region27: #{conv1d_block_forward.1} parent=11 // pred_region
          _
        $region28: #{conv1d_block_forward.1} parent=11 // pred_fallthru
          _
        // Predicated region
        $region29: #{conv1d_block_forward.1} parent=11 // pred_check
          %p211 = pneg %p147
        $region30: #{conv1d_block_forward.1} parent=11 // pred_check_branch
          %213 = sbr.rel (%p211) target = $region32
        $region31: #{conv1d_block_forward.1} parent=11 // pred_region
          _
        $region32: #{conv1d_block_forward.1} parent=11 // pred_fallthru
          _
      $region12: #{conv1d_block_forward.1} parent=5 // pred_fallthru
        _
      %p214 = scmp.lt.s32.totalorder %s16, 2
      // Predicated region
      $region33: #{conv1d_block_forward.1} parent=5 // pred_check
        %p215 = pneg %p214
      $region34: #{conv1d_block_forward.1} parent=5 // pred_check_branch
        %217 = sbr.rel (%p215) target = $region36
      $region35: #{conv1d_block_forward.1} parent=5 // pred_region
        // Predicated region
        $region37: #{conv1d_block_forward.1} parent=35 // pred_check
          %p218 = pneg %p36
        $region38: #{conv1d_block_forward.1} parent=35 // pred_check_branch
          %220 = sbr.rel (%p218) target = $region40
        $region39: #{conv1d_block_forward.1} parent=35 // pred_region
          %p221 = scmp.lt.s32.totalorder %s16, 1
          %s222 = scalar_select %p221, %s16, 1
          %s223 = smul.addr %s222, 3
          %s224 = smul.addr %s223, 8
          %s225 = scalar_lea.vmem %s0, %s224
        $region40: #{conv1d_block_forward.1} parent=35 // pred_fallthru
          _
      $region36: #{conv1d_block_forward.1} parent=5 // pred_fallthru
        _
      %p226 = scmp.le.s32.totalorder 1, %s16
      %p227 = scmp.lt.s32.totalorder %s16, 3
      %p228 = pnand %p226, %p227
      %p229 = pneg %p228
      // Predicated region
      $region41: #{conv1d_block_forward.1} parent=5 // pred_check
        _
      $region42: #{conv1d_block_forward.1} parent=5 // pred_check_branch
        %231 = sbr.rel (%p228) target = $region44
      $region43: #{conv1d_block_forward.1} parent=5 // pred_region
        %s232 = ssub.s32 %s16, 1
        // Predicated region
        $region45: #{conv1d_block_forward.1} parent=43 // pred_check
          %p233 = pneg %p63
        $region46: #{conv1d_block_forward.1} parent=43 // pred_check_branch
          %235 = sbr.rel (%p233) target = $region48
        $region47: #{conv1d_block_forward.1} parent=43 // pred_region
          %237 = dma.done [#allocation3], 2560
        $region48: #{conv1d_block_forward.1} parent=43 // pred_fallthru
          _
        %p238 = scmp.lt.s32.totalorder %s21, 1
        %s239 = scalar_select %p238, %s21, 1
        %s240 = smul.addr %s239, 3
        %s241 = smul.addr %s240, 8
        %s242 = scalar_lea.vmem %s0, %s241
        %p243 = pneg %p42
        %p244 = pneg %p39
        %p245 = pneg %p63
        %p246 = pneg %p60
        %p247 = pneg %p84
        %p248 = pneg %p81
        %p249 = pneg %p105
        %p250 = pneg %p102
        %p251 = pneg %p126
        %p252 = pneg %p123
        %p253 = pneg %p147
        %p254 = pneg %p144
        %p255 = pneg %p173
        %p256 = pneg %p170
        %s257 = sand.u32 %s160, 1
        %s258 = scalar_lea.sflag [#allocation4], %s257
        %s259 = sand.u32 %s160, 1
        %s260 = smul.addr %s259, 16
        %s261 = scalar_lea.vmem [#allocation5], %s260
        %p262 = scmp.lt.s32.totalorder %s21, 1
        %s263 = scalar_select %p262, %s21, 1
        %s264 = smul.addr %s263, 3
        %s265 = smul.addr %s264, 8
        %s266 = scalar_lea.vmem %s0, %s265
        %v267 = vld [vmem:[%s2] sm:$0x1]
        %v269 = vperm.slane %v267, 0
        %v271 = vld [vmem:[%s266] sm:$0xff]
        %v272 = vld [vmem:[%s266 + $0x8] sm:$0xff]
        %v273 = vld [vmem:[#allocation2] sm:$0xff]
        %v274 = vld [vmem:[#allocation2 + $0x8] sm:$0xff]
        %v275 = vld [vmem:[#allocation2 + $0x10] sm:$0xff]
        %v276 = vld [vmem:[#allocation2 + $0x18] sm:$0xff]
        %vm277 = vcmask 261120
        %v279 = vsel %vm277, %v271, 0
        %v282 = vsel %vm277, %v272, 0
        %284 = vmatpush.msra.mxu0 0.0
        %285 = vmatpush.msra.mxu0 0.0
        %286 = vmatpush.msra.mxu0 0.0
        %287 = vmatpush.msra.mxu0 0.0
        %288 = vmatpush.msra.mxu0 0.0
        %289 = vmatpush.msra.mxu0 0.0
        %290 = vmatpush.msra.mxu0 0.0
        %291 = vmatpush.msra.mxu0 0.0
        %292 = vmatpush.msra.mxu0 0.0
        %293 = vmatpush.msra.mxu0 0.0
        %294 = vmatpush.msra.mxu0 0.0
        %295 = vmatpush.msra.mxu0 0.0
        %296 = vmatpush.msra.mxu0 %v276
        %297 = vmatpush.msra.mxu0 %v275
        %298 = vmatpush.msra.mxu0 %v274
        %299 = vmatpush.msra.mxu0 %v273
        %300 = vmatmul.f32.gmra.mxu0 %v279
        %v301 = vpop.f32.mrf.mxu0
        %v302 = vadd.f32 0.0, %v301
        %303 = vmatmul.f32.gmra.mxu0 %v282
        %v304 = vpop.f32.mrf.mxu0
        %v305 = vadd.f32 0.0, %v304
        %306 = vdwg.mxu0
        %v307 = vadd.f32 %v269, %v302
        %v308 = vadd.f32 %v269, %v305
        %v309 = vld [vmem:[%s266 + $0x1] sm:$0xff]
        %v310 = vld [vmem:[%s266 + $0x9] sm:$0xff]
        %s311 = scalar_lea.vmem [#allocation2], 32
        %v312 = vld [vmem:[%s311] sm:$0xff]
        %v313 = vld [vmem:[%s311 + $0x8] sm:$0xff]
        %v314 = vld [vmem:[%s311 + $0x10] sm:$0xff]
        %v315 = vld [vmem:[%s311 + $0x18] sm:$0xff]
        %v317 = vsel %vm277, %v309, 0
        %v320 = vsel %vm277, %v310, 0
        %322 = vmatpush.msra.mxu0 0.0
        %323 = vmatpush.msra.mxu0 0.0
        %324 = vmatpush.msra.mxu0 0.0
        %325 = vmatpush.msra.mxu0 0.0
        %326 = vmatpush.msra.mxu0 0.0
        %327 = vmatpush.msra.mxu0 0.0
        %328 = vmatpush.msra.mxu0 0.0
        %329 = vmatpush.msra.mxu0 0.0
        %330 = vmatpush.msra.mxu0 0.0
        %331 = vmatpush.msra.mxu0 0.0
        %332 = vmatpush.msra.mxu0 0.0
        %333 = vmatpush.msra.mxu0 0.0
        %334 = vmatpush.msra.mxu0 %v315
        %335 = vmatpush.msra.mxu0 %v314
        %336 = vmatpush.msra.mxu0 %v313
        %337 = vmatpush.msra.mxu0 %v312
        %338 = vmatmul.f32.gmra.mxu0 %v317
        %v339 = vpop.f32.mrf.mxu0
        %v340 = vadd.f32 0.0, %v339
        %341 = vmatmul.f32.gmra.mxu0 %v320
        %v342 = vpop.f32.mrf.mxu0
        %v343 = vadd.f32 0.0, %v342
        %344 = vdwg.mxu0
        %v345 = vadd.f32 %v307, %v340
        %v346 = vadd.f32 %v308, %v343
        %v347 = vld [vmem:[%s266 + $0x2] sm:$0xff]
        %v348 = vld [vmem:[%s266 + $0xa] sm:$0xff]
        %s349 = scalar_lea.vmem [#allocation2], 64
        %v350 = vld [vmem:[%s349] sm:$0xff]
        %v351 = vld [vmem:[%s349 + $0x8] sm:$0xff]
        %v352 = vld [vmem:[%s349 + $0x10] sm:$0xff]
        %v353 = vld [vmem:[%s349 + $0x18] sm:$0xff]
        %v355 = vsel %vm277, %v347, 0
        %v358 = vsel %vm277, %v348, 0
        %360 = vmatpush.msra.mxu0 0.0
        %361 = vmatpush.msra.mxu0 0.0
        %362 = vmatpush.msra.mxu0 0.0
        %363 = vmatpush.msra.mxu0 0.0
        %364 = vmatpush.msra.mxu0 0.0
        %365 = vmatpush.msra.mxu0 0.0
        %366 = vmatpush.msra.mxu0 0.0
        %367 = vmatpush.msra.mxu0 0.0
        %368 = vmatpush.msra.mxu0 0.0
        %369 = vmatpush.msra.mxu0 0.0
        %370 = vmatpush.msra.mxu0 0.0
        %371 = vmatpush.msra.mxu0 0.0
        %372 = vmatpush.msra.mxu0 %v353
        %373 = vmatpush.msra.mxu0 %v352
        %374 = vmatpush.msra.mxu0 %v351
        %375 = vmatpush.msra.mxu0 %v350
        %376 = vmatmul.f32.gmra.mxu0 %v355
        %v377 = vpop.f32.mrf.mxu0
        %v378 = vadd.f32 0.0, %v377
        %379 = vmatmul.f32.gmra.mxu0 %v358
        %v380 = vpop.f32.mrf.mxu0
        %v381 = vadd.f32 0.0, %v380
        %382 = vdwg.mxu0
        %v383 = vadd.f32 %v345, %v378
        %v384 = vadd.f32 %v346, %v381
        %v385 = vld [vmem:[%s266 + $0x3] sm:$0xff]
        %v386 = vld [vmem:[%s266 + $0xb] sm:$0xff]
        %s387 = scalar_lea.vmem [#allocation2], 96
        %v388 = vld [vmem:[%s387] sm:$0xff]
        %v389 = vld [vmem:[%s387 + $0x8] sm:$0xff]
        %v390 = vld [vmem:[%s387 + $0x10] sm:$0xff]
        %v391 = vld [vmem:[%s387 + $0x18] sm:$0xff]
        %v393 = vsel %vm277, %v385, 0
        %v396 = vsel %vm277, %v386, 0
        %398 = vmatpush.msra.mxu0 0.0
        %399 = vmatpush.msra.mxu0 0.0
        %400 = vmatpush.msra.mxu0 0.0
        %401 = vmatpush.msra.mxu0 0.0
        %402 = vmatpush.msra.mxu0 0.0
        %403 = vmatpush.msra.mxu0 0.0
        %404 = vmatpush.msra.mxu0 0.0
        %405 = vmatpush.msra.mxu0 0.0
        %406 = vmatpush.msra.mxu0 0.0
        %407 = vmatpush.msra.mxu0 0.0
        %408 = vmatpush.msra.mxu0 0.0
        %409 = vmatpush.msra.mxu0 0.0
        %410 = vmatpush.msra.mxu0 %v391
        %411 = vmatpush.msra.mxu0 %v390
        %412 = vmatpush.msra.mxu0 %v389
        %413 = vmatpush.msra.mxu0 %v388
        %414 = vmatmul.f32.gmra.mxu0 %v393
        %v415 = vpop.f32.mrf.mxu0
        %v416 = vadd.f32 0.0, %v415
        %417 = vmatmul.f32.gmra.mxu0 %v396
        %v418 = vpop.f32.mrf.mxu0
        %v419 = vadd.f32 0.0, %v418
        %420 = vdwg.mxu0
        %v421 = vadd.f32 %v383, %v416
        %v422 = vadd.f32 %v384, %v419
        %v423 = vld [vmem:[%s266 + $0x4] sm:$0xff]
        %v424 = vld [vmem:[%s266 + $0xc] sm:$0xff]
        %s425 = scalar_lea.vmem [#allocation2], 128
        %v426 = vld [vmem:[%s425] sm:$0xff]
        %v427 = vld [vmem:[%s425 + $0x8] sm:$0xff]
        %v428 = vld [vmem:[%s425 + $0x10] sm:$0xff]
        %v429 = vld [vmem:[%s425 + $0x18] sm:$0xff]
        %v431 = vsel %vm277, %v423, 0
        %v434 = vsel %vm277, %v424, 0
        %436 = vmatpush.msra.mxu0 0.0
        %437 = vmatpush.msra.mxu0 0.0
        %438 = vmatpush.msra.mxu0 0.0
        %439 = vmatpush.msra.mxu0 0.0
        %440 = vmatpush.msra.mxu0 0.0
        %441 = vmatpush.msra.mxu0 0.0
        %442 = vmatpush.msra.mxu0 0.0
        %443 = vmatpush.msra.mxu0 0.0
        %444 = vmatpush.msra.mxu0 0.0
        %445 = vmatpush.msra.mxu0 0.0
        %446 = vmatpush.msra.mxu0 0.0
        %447 = vmatpush.msra.mxu0 0.0
        %448 = vmatpush.msra.mxu0 %v429
        %449 = vmatpush.msra.mxu0 %v428
        %450 = vmatpush.msra.mxu0 %v427
        %451 = vmatpush.msra.mxu0 %v426
        %452 = vmatmul.f32.gmra.mxu0 %v431
        %v453 = vpop.f32.mrf.mxu0
        %v454 = vadd.f32 0.0, %v453
        %455 = vmatmul.f32.gmra.mxu0 %v434
        %v456 = vpop.f32.mrf.mxu0
        %v457 = vadd.f32 0.0, %v456
        %458 = vdwg.mxu0
        %v459 = vadd.f32 %v421, %v454
        %v460 = vadd.f32 %v422, %v457
        %vm461 = vcmask 523264
        %v462 = vsel %vm461, %v459, 0.0
        %v463 = vsel %vm461, %v460, 0.0
        %v464 = vadd.f32 %v462, %v463
        %v465 = vrot.slane %v464, 4
        %v466 = vadd.f32 %v464, %v465
        %v467 = vrot.slane %v466, 2
        %v468 = vadd.f32 %v466, %v467
        %v469 = vrot.slane %v468, 1
        %v470 = vadd.f32 %v468, %v469
        %v471 = vmul.f32 %v459, %v459
        %v472 = vmul.f32 %v460, %v460
        %v473 = vsel %vm461, %v471, 0.0
        %v474 = vsel %vm461, %v472, 0.0
        %v475 = vadd.f32 %v473, %v474
        %v476 = vrot.slane %v475, 4
        %v477 = vadd.f32 %v475, %v476
        %v478 = vrot.slane %v477, 2
        %v479 = vadd.f32 %v477, %v478
        %v480 = vrot.slane %v479, 1
        %v481 = vadd.f32 %v479, %v480
        %v482 = vld [vmem:[%s5] sm:$0xff]
        %v483 = vld [vmem:[%s5 + $0x8] sm:$0xff]
        %v484 = vld [vmem:[%s5 + $0x10] sm:$0xff]
        %v485 = vld [vmem:[%s5 + $0x18] sm:$0xff]
        %v486 = vld [vmem:[%s5 + $0x20] sm:$0xff]
        %v487 = vld [vmem:[%s5 + $0x28] sm:$0xff]
        %v488 = vld [vmem:[%s5 + $0x30] sm:$0xff]
        %v489 = vld [vmem:[%s5 + $0x38] sm:$0xff]
        %v491 = vsel %vm461, %v470, 0
        %493 = vmatpush.msra.mxu0 0.0
        %494 = vmatpush.msra.mxu0 0.0
        %495 = vmatpush.msra.mxu0 0.0
        %496 = vmatpush.msra.mxu0 0.0
        %497 = vmatpush.msra.mxu0 0.0
        %498 = vmatpush.msra.mxu0 0.0
        %499 = vmatpush.msra.mxu0 0.0
        %500 = vmatpush.msra.mxu0 0.0
        %501 = vmatpush.msra.mxu0 %v489
        %502 = vmatpush.msra.mxu0 %v488
        %503 = vmatpush.msra.mxu0 %v487
        %504 = vmatpush.msra.mxu0 %v486
        %505 = vmatpush.msra.mxu0 %v485
        %506 = vmatpush.msra.mxu0 %v484
        %507 = vmatpush.msra.mxu0 %v483
        %508 = vmatpush.msra.mxu0 %v482
        %509 = vmatmul.f32.gmra.mxu0 %v491
        %v510 = vpop.f32.mrf.mxu0
        %v511 = vadd.f32 0.0, %v510
        %512 = vdwg.mxu0
        %v514 = vsel %vm461, %v481, 0
        %516 = vmatpush.msra.mxu0 0.0
        %517 = vmatpush.msra.mxu0 0.0
        %518 = vmatpush.msra.mxu0 0.0
        %519 = vmatpush.msra.mxu0 0.0
        %520 = vmatpush.msra.mxu0 0.0
        %521 = vmatpush.msra.mxu0 0.0
        %522 = vmatpush.msra.mxu0 0.0
        %523 = vmatpush.msra.mxu0 0.0
        %524 = vmatpush.msra.mxu0 %v489
        %525 = vmatpush.msra.mxu0 %v488
        %526 = vmatpush.msra.mxu0 %v487
        %527 = vmatpush.msra.mxu0 %v486
        %528 = vmatpush.msra.mxu0 %v485
        %529 = vmatpush.msra.mxu0 %v484
        %530 = vmatpush.msra.mxu0 %v483
        %531 = vmatpush.msra.mxu0 %v482
        %532 = vmatmul.f32.gmra.mxu0 %v514
        %v533 = vpop.f32.mrf.mxu0
        %v534 = vadd.f32 0.0, %v533
        %535 = vdwg.mxu0
        %v536 = vmul.f32 %v511, 0.0078125
        %v537 = vmul.f32 %v534, 0.0078125
        %v538 = vmul.f32 %v536, %v536
        %v539 = vsub.f32 %v537, %v538
        %v540 = vadd.f32 %v539, 1e-05
        %v541 = vrsqrt.pop %v540
        %v542 = vmul.f32 %v541, %v540
        %v543 = vmul.f32 %v542, %v541
        %v544 = vmul.f32 0.5, %v543
        %v545 = vsub.f32 1.5, %v544
        %v546 = vmul.f32 %v541, %v545
        %vm547 = vweird.f32 %v540
        %vm548 = vweird.f32 %v541
        %vm549 = vmor %vm547, %vm548
        %v550 = vsel %vm549, %v541, %v546
        %v551 = vperm.slane %v536, 0
        %v552 = vsub.f32 %v459, %v551
        %v553 = vsub.f32 %v460, %v551
        %v554 = vperm.slane %v550, 0
        %v555 = vmul.f32 %v552, %v554
        %v556 = vmul.f32 %v553, %v554
        %v557 = vld [vmem:[%s3] sm:$0x1]
        %v559 = vperm.slane %v557, 0
        %v561 = vmul.f32 %v555, %v559
        %v562 = vmul.f32 %v556, %v559
        %v563 = vld [vmem:[%s4] sm:$0x1]
        %v565 = vperm.slane %v563, 0
        %v567 = vadd.f32 %v561, %v565
        %v568 = vadd.f32 %v562, %v565
        %v569 = vmax.f32 %v567, 0.0
        %v570 = vmax.f32 %v568, 0.0
        %v571 = vand.u32 2147483647, %v567
        %v572 = vand.u32 2147483647, %v568
        %v573 = vsub.f32 0.0, %v571
        %v574 = vsub.f32 0.0, %v572
        %v575 = vmul.f32 %v573, 1.442695
        %v576 = vpow.pop %v575
        %v577 = vmul.f32 %v574, 1.442695
        %v578 = vpow.pop %v577
        %v579 = vadd.f32 %v576, 1.0
        %v580 = vadd.f32 %v578, 1.0
        %v581 = vlog2.pop %v579
        %v582 = vmul.f32 %v581, 0.6931472
        %v583 = vlog2.pop %v580
        %v584 = vmul.f32 %v583, 0.6931472
        %v585 = vadd.f32 %v569, %v582
        %v586 = vadd.f32 %v570, %v584
        %v587 = vtanh.pop %v585
        %v588 = vtanh.pop %v586
        %v589 = vmul.f32 %v567, %v587
        %v590 = vmul.f32 %v568, %v588
        %591 = vst.msk [vmem:[%s261] sm:$0xff] %vm461, %v589
        %592 = vst.msk [vmem:[%s261 + $0x8] sm:$0xff] %vm461, %v590
        %s593 = sand.u32 %s160, 1
        %s594 = scalar_lea.sflag [#allocation4], %s593
        %s595 = sand.u32 %s160, 1
        %s596 = smul.addr %s595, 16
        %s597 = scalar_lea.vmem [#allocation5], %s596
        // Predicated region
        $region49: #{conv1d_block_forward.1} parent=43 // pred_check
          %p598 = pneg %p170
        $region50: #{conv1d_block_forward.1} parent=43 // pred_check_branch
          %600 = sbr.rel (%p598) target = $region52
        $region51: #{conv1d_block_forward.1} parent=43 // pred_region
          %602 = vsyncadd %s594, 0
          %s603 = smul.addr %s21, 2
          %s604 = smul.addr %s603, 8
          %s605 = scalar_lea.hbm %s6, %s604
          %s606 = sshll.u32 %s597, 4
          %s607 = int_to_ptr.vmem [resolvable:$true] %s606
          %s608 = sshll.u32 %s605, 4
          %s609 = int_to_ptr.hbm [resolvable:$true] %s608
          %614 = dma.vmem_to_hbm [thread:$0]  %s607, 256, %s609, %s594, 128, 128, 8
        $region52: #{conv1d_block_forward.1} parent=43 // pred_fallthru
          _
      $region44: #{conv1d_block_forward.1} parent=5 // pred_fallthru
        _
      %p615 = scmp.le.s32.totalorder 2, %s16
      // Predicated region
      $region53: #{conv1d_block_forward.1} parent=5 // pred_check
        %p616 = pneg %p615
      $region54: #{conv1d_block_forward.1} parent=5 // pred_check_branch
        %618 = sbr.rel (%p616) target = $region56
      $region55: #{conv1d_block_forward.1} parent=5 // pred_region
        %s619 = ssub.s32 %s16, 2
        // Predicated region
        $region57: #{conv1d_block_forward.1} parent=55 // pred_check
          %p620 = pneg %p176
        $region58: #{conv1d_block_forward.1} parent=55 // pred_check_branch
          %622 = sbr.rel (%p620) target = $region60
        $region59: #{conv1d_block_forward.1} parent=55 // pred_region
          %s623 = sand.u32 %s161, 1
          %s624 = scalar_lea.sflag [#allocation4], %s623
          %s625 = sand.u32 %s161, 1
          %s626 = smul.addr %s625, 16
          %s627 = scalar_lea.vmem [#allocation5], %s626
          %629 = dma.done %s624, 256
        $region60: #{conv1d_block_forward.1} parent=55 // pred_fallthru
          _
      $region56: #{conv1d_block_forward.1} parent=5 // pred_fallthru
        _
    $region6: #{conv1d_block_forward.1} parent=1 // loop_footer
      %s20 = sadd.s32 1, %s16
    $region7: #{conv1d_block_forward.1} parent=1 // loop_footer_branch
      %15 = sbr.rel target = $region3
    $region8: #{conv1d_block_forward.1} parent=1 // loop_exit
      _
    %630 = vsyncpa [#allocation3], 1
    %s631 = scalar_lea.sflag [#allocation3], 1
    %632 = vsyncpa %s631, 1
    %633 = vsyncpa [#allocation4], 1
    %s634 = scalar_lea.sflag [#allocation4], 1
    %635 = vsyncpa %s634, 1

</llo_original>
